<compile_context>
chip_gen: v5e
topology: v5e:2x2
jax: 0.10.0
libtpu: 0.0.40
codegen_flags: <defaults>
</compile_context>

<pallas_src>
import functools

import jax
import jax.numpy as jnp
from jax.experimental import pallas as pl
from jax.experimental.pallas import tpu as pltpu


def _store_and_maybe_finalize(slab, keep_ref, out_ref, *, t_s, average):
    """Store one (T_S, D_pad) slab; in 'average' mode blend at the last chunk."""
    c = pl.program_id(1)

    if not average:
        # Pure lookup: out_ref is the (T_S, D_pad) block for this chunk.
        out_ref[...] = slab.astype(out_ref.dtype)
        return

    # 'average' mode: out_ref is the (S_pad, D_pad) block resident across the
    # chunk axis for this batch element.
    off = pl.multiple_of(c * t_s, t_s)
    keep = keep_ref[pl.ds(off, t_s), :]                        # (T_S, 1) f32
    masked = slab.astype(jnp.float32) * keep                   # (T_S, D_pad)
    out_ref[pl.ds(off, t_s), :] = masked.astype(out_ref.dtype)

    @pl.when(c == pl.num_programs(1) - 1)
    def _():
        full = out_ref[...].astype(jnp.float32)                # (S_pad, D_pad)
        keep_all = keep_ref[...]                               # (S_pad, 1)
        total = jnp.sum(full, axis=0, keepdims=True)           # (1, D_pad)
        count = jnp.sum(keep_all, axis=0, keepdims=True)       # (1, 1)
        avg = total / (count + 1e-8)                           # (1, D_pad)
        out_ref[...] = (full + (1.0 - keep_all) * avg).astype(out_ref.dtype)


def _w2v_vmem_table_kernel(ids_sref, table_ref, keep_ref, out_ref, *,
                           t_s, s_pad, average):
    """Fast path: table fully resident in VMEM; gather via dynamic-index vld."""
    b = pl.program_id(0)
    c = pl.program_id(1)
    base = b * s_pad + c * t_s

    rows = []
    for t in range(t_s):                        # static unroll over the chunk
        tok = ids_sref[base + t]                # SMEM scalar read
        rows.append(table_ref[pl.ds(tok, 1), :])
    slab = jnp.concatenate(rows, axis=0)        # (T_S, D_pad)

    _store_and_maybe_finalize(slab, keep_ref, out_ref, t_s=t_s, average=average)


def _w2v_hbm_gather_kernel(ids_sref, table_hbm, keep_ref, out_ref, buf, sems,
                           *, t_s, s_pad, average):
    """Fallback: table in HBM; double-buffered per-row DMA gather (P4)."""
    b = pl.program_id(0)
    c = pl.program_id(1)
    nc = pl.num_programs(1)
    slot = c & 1

    def start_fetch(chunk, to_slot):
        base = b * s_pad + chunk * t_s
        for t in range(t_s):
            tok = ids_sref[base + t]
            pltpu.make_async_copy(
                table_hbm.at[pl.ds(tok, 1), :],
                buf.at[to_slot, pl.ds(t, 1), :],
                sems.at[to_slot, t]).start()

    @pl.when(c == 0)                            # prime first chunk of this b
    def _():
        start_fetch(c, slot)

    @pl.when(c + 1 < nc)                        # prefetch next chunk
    def _():
        start_fetch(c + 1, 1 - slot)

    for t in range(t_s):                        # wait for this chunk's rows
        pltpu.make_async_copy(
            table_hbm.at[pl.ds(0, 1), :],
            buf.at[slot, pl.ds(t, 1), :],
            sems.at[slot, t]).wait()

    slab = buf[slot]                            # (T_S, D_pad)
    _store_and_maybe_finalize(slab, keep_ref, out_ref, t_s=t_s, average=average)


def word2vec_embedding_forward(input_ids, table, *, pad_id, unk_id,
                               oov_handling="average", chunk_tokens=None,
                               force_hbm_gather=False,
                               vmem_table_budget_bytes=None):
    """Pallas implementation of Word2VecEmbedding.forward."""
    assert oov_handling in ("using_unk", "average"), oov_handling
    B, S = input_ids.shape
    V, D = table.shape
    dtype = jnp.dtype(table.dtype)
    itemsize = dtype.itemsize
    average = (oov_handling == "average")

    # Lane-dense embedding dim, sublane-dense chunk size.
    D_pad = max(128, ((D + 127) // 128) * 128)
    if chunk_tokens is None:
        chunk_tokens = 32 if S >= 32 else 8
    T_S = max(8, (chunk_tokens // 8) * 8)
    S_pad = ((S + T_S - 1) // T_S) * T_S
    num_chunks = S_pad // T_S
    V_pad = ((V + 7) // 8) * 8

    if (V_pad, D_pad) != (V, D):
        table = jnp.pad(table, ((0, V_pad - V), (0, D_pad - D)))

    raw = input_ids.astype(jnp.int32)
    if S_pad != S:
        raw = jnp.pad(raw, ((0, 0), (0, S_pad - S)), constant_values=pad_id)
    # keep-mask on RAW ids (reference semantics); padded positions are pad_id
    # so they drop out of the average automatically.
    keep = ((raw != unk_id) & (raw != pad_id)).astype(jnp.float32)[..., None]
    # Only the gather index is clamped in-bounds; 1-D avoids SMEM padding.
    ids_flat = jnp.clip(raw, 0, V - 1).reshape(-1)             # (B*S_pad,)

    # ---- VMEM budgeting / path selection --------------------------------
    try:
        vmem_cap = int(pltpu.get_tpu_info().vmem_capacity_bytes)
    except Exception:
        vmem_cap = 64 * 1024 * 1024                            # v7x per-core floor
    table_bytes = V_pad * D_pad * itemsize
    out_block_bytes = S_pad * D_pad * itemsize
    base_need = 2 * out_block_bytes + 2 * S_pad * 4 + (1 << 20)
    budget = (vmem_table_budget_bytes if vmem_table_budget_bytes is not None
              else vmem_cap // 2)
    use_vmem_table = (not force_hbm_gather) and (
        2 * table_bytes + base_need <= budget)

    if use_vmem_table:
        need = 2 * table_bytes + base_need
        kernel = functools.partial(_w2v_vmem_table_kernel,
                                   t_s=T_S, s_pad=S_pad, average=average)
        table_spec = pl.BlockSpec((V_pad, D_pad), lambda b, c, ids: (0, 0))
        scratch = []
    else:
        need = base_need + 2 * T_S * D_pad * itemsize
        kernel = functools.partial(_w2v_hbm_gather_kernel,
                                   t_s=T_S, s_pad=S_pad, average=average)
        table_spec = pl.BlockSpec(memory_space=pl.ANY)         # stays in HBM
        scratch = [pltpu.VMEM((2, T_S, D_pad), dtype),
                   pltpu.SemaphoreType.DMA((2, T_S))]

    vmem_limit = int(min(max(need + (4 << 20), 16 << 20), int(vmem_cap * 0.9)))

    keep_spec = pl.BlockSpec((pl.Squeezed(), S_pad, 1),
                             lambda b, c, ids: (b, 0, 0))
    if average:
        # Output resident across the chunk (reduction) axis per batch element
        # so the per-sequence average can be blended in at the last chunk.
        out_spec = pl.BlockSpec((pl.Squeezed(), S_pad, D_pad),
                                lambda b, c, ids: (b, 0, 0))
    else:
        # Pure lookup: stream dense (T_S, D_pad) blocks straight out.
        out_spec = pl.BlockSpec((pl.Squeezed(), T_S, D_pad),
                                lambda b, c, ids: (b, c, 0))

    out = pl.pallas_call(
        kernel,
        out_shape=jax.ShapeDtypeStruct((B, S_pad, D_pad), dtype),
        grid_spec=pltpu.PrefetchScalarGridSpec(
            num_scalar_prefetch=1,           # ids -> SMEM, drive the gather
            grid=(B, num_chunks),
            in_specs=[table_spec, keep_spec],
            out_specs=out_spec,
            scratch_shapes=scratch),
        compiler_params=pltpu.CompilerParams(
            dimension_semantics=("parallel", "arbitrary"),
            vmem_limit_bytes=vmem_limit),
    )(ids_flat, table, keep)

    return out[:, :S, :D]


def _reference_forward(input_ids, table, *, pad_id, unk_id, oov_handling):
    """Pure-JAX reference mirroring the PyTorch forward semantics."""
    emb = table[input_ids]                                             # (B,S,D)
    if oov_handling == "using_unk":
        return emb
    mask = ((input_ids != unk_id) & (input_ids != pad_id)).astype(jnp.float32)
    mask = mask[..., None]                                             # (B,S,1)
    sum_emb = jnp.sum(emb * mask, axis=1)                              # (B,D)
    count = jnp.sum(mask, axis=1)                                      # (B,1)
    avg = sum_emb / (count + 1e-8)                                     # (B,D)
    avg = jnp.broadcast_to(avg[:, None, :], emb.shape)                 # (B,S,D)
    return emb * mask + avg * (1.0 - mask)


if __name__ == "__main__":
    # Small synthetic configuration consistent with the module.  D=120 and
    # S=20 exercise the lane / chunk padding paths (D_pad=128, S_pad=24,
    # 3 chunks of T_S=8 tokens).
    V, D = 500, 120
    B, S = 2, 20
    PAD_ID, UNK_ID = 0, 1

    key = jax.random.PRNGKey(0)
    k_table, k_ids = jax.random.split(key)

    # Deterministic synthetic "pretrained" table; pad row zeroed as in the
    # module's __init__ (gensim/difflib vocab construction is host-side).
    table = jax.random.normal(k_table, (V, D), dtype=jnp.float32)
    table = table.at[PAD_ID].set(0.0)

    input_ids = jax.random.randint(k_ids, (B, S), 0, V, dtype=jnp.int32)
    input_ids = input_ids.at[0, 0].set(UNK_ID)
    input_ids = input_ids.at[0, S - 1].set(PAD_ID)
    input_ids = input_ids.at[1, 3].set(UNK_ID)

    ok = True
    for mode in ("using_unk", "average"):
        ref = _reference_forward(input_ids, table, pad_id=PAD_ID,
                                 unk_id=UNK_ID, oov_handling=mode)
        for force_hbm in (False, True):       # exercise both gather paths
            out = word2vec_embedding_forward(
                input_ids, table, pad_id=PAD_ID, unk_id=UNK_ID,
                oov_handling=mode, force_hbm_gather=force_hbm)
            out = jax.block_until_ready(out)
            if not jnp.allclose(out, ref, atol=1e-5, rtol=1e-5):
                ok = False
                print(f"MISMATCH mode={mode} hbm_gather={force_hbm}: "
                      f"max abs err = {float(jnp.max(jnp.abs(out - ref)))}")

    if ok:
        print("KERNEL_OK")
</pallas_src>

<mosaic_0001>
module attributes {stable_mosaic.version = 11 : i64} {
  func.func @_w2v_vmem_table_kernel(%arg0: i32, %arg1: i32, %arg2: memref<48xi32, #tpu.memory_space<smem>>, %arg3: memref<504x128xf32, #tpu.memory_space<vmem>>, %arg4: memref<1x24x1xf32, #tpu.memory_space<vmem>>, %arg5: memref<1x8x128xf32, #tpu.memory_space<vmem>>) attributes {dimension_semantics = [#tpu.dimension_semantics<parallel>, #tpu.dimension_semantics<arbitrary>], iteration_bounds = array<i64: 2, 3>, scalar_prefetch = 1 : i64, scratch_operands = 0 : i64, tpu.core_type = #tpu.core_type<tc>, window_params = [{pipeline_mode = #tpu.pipeline_mode<synchronous>, transform_indices = @transform_0, window_bounds = array<i64: 504, 128>}, {transform_indices = @transform_1, window_bounds = array<i64: 1, 24, 1>}, {transform_indices = @transform_2, window_bounds = array<i64: 1, 8, 128>}]} {
    %c24_i32 = arith.constant 24 : i32
    %0 = arith.muli %arg0, %c24_i32 : i32
    %c8_i32 = arith.constant 8 : i32
    %1 = arith.muli %arg1, %c8_i32 : i32
    %2 = arith.addi %0, %1 : i32
    %c0_i32 = arith.constant 0 : i32
    %3 = arith.addi %2, %c0_i32 : i32
    %4 = arith.index_cast %3 : i32 to index
    %5 = memref.load %arg2[%4] : memref<48xi32, #tpu.memory_space<smem>>
    %6 = arith.index_cast %5 : i32 to index
    %c0 = arith.constant 0 : index
    %7 = vector.load %arg3[%6, %c0] : memref<504x128xf32, #tpu.memory_space<vmem>>, vector<1x128xf32>
    %c1_i32 = arith.constant 1 : i32
    %8 = arith.addi %2, %c1_i32 : i32
    %9 = arith.index_cast %8 : i32 to index
    %10 = memref.load %arg2[%9] : memref<48xi32, #tpu.memory_space<smem>>
    %11 = arith.index_cast %10 : i32 to index
    %c0_0 = arith.constant 0 : index
    %12 = vector.load %arg3[%11, %c0_0] : memref<504x128xf32, #tpu.memory_space<vmem>>, vector<1x128xf32>
    %c2_i32 = arith.constant 2 : i32
    %13 = arith.addi %2, %c2_i32 : i32
    %14 = arith.index_cast %13 : i32 to index
    %15 = memref.load %arg2[%14] : memref<48xi32, #tpu.memory_space<smem>>
    %16 = arith.index_cast %15 : i32 to index
    %c0_1 = arith.constant 0 : index
    %17 = vector.load %arg3[%16, %c0_1] : memref<504x128xf32, #tpu.memory_space<vmem>>, vector<1x128xf32>
    %c3_i32 = arith.constant 3 : i32
    %18 = arith.addi %2, %c3_i32 : i32
    %19 = arith.index_cast %18 : i32 to index
    %20 = memref.load %arg2[%19] : memref<48xi32, #tpu.memory_space<smem>>
    %21 = arith.index_cast %20 : i32 to index
    %c0_2 = arith.constant 0 : index
    %22 = vector.load %arg3[%21, %c0_2] : memref<504x128xf32, #tpu.memory_space<vmem>>, vector<1x128xf32>
    %c4_i32 = arith.constant 4 : i32
    %23 = arith.addi %2, %c4_i32 : i32
    %24 = arith.index_cast %23 : i32 to index
    %25 = memref.load %arg2[%24] : memref<48xi32, #tpu.memory_space<smem>>
    %26 = arith.index_cast %25 : i32 to index
    %c0_3 = arith.constant 0 : index
    %27 = vector.load %arg3[%26, %c0_3] : memref<504x128xf32, #tpu.memory_space<vmem>>, vector<1x128xf32>
    %c5_i32 = arith.constant 5 : i32
    %28 = arith.addi %2, %c5_i32 : i32
    %29 = arith.index_cast %28 : i32 to index
    %30 = memref.load %arg2[%29] : memref<48xi32, #tpu.memory_space<smem>>
    %31 = arith.index_cast %30 : i32 to index
    %c0_4 = arith.constant 0 : index
    %32 = vector.load %arg3[%31, %c0_4] : memref<504x128xf32, #tpu.memory_space<vmem>>, vector<1x128xf32>
    %c6_i32 = arith.constant 6 : i32
    %33 = arith.addi %2, %c6_i32 : i32
    %34 = arith.index_cast %33 : i32 to index
    %35 = memref.load %arg2[%34] : memref<48xi32, #tpu.memory_space<smem>>
    %36 = arith.index_cast %35 : i32 to index
    %c0_5 = arith.constant 0 : index
    %37 = vector.load %arg3[%36, %c0_5] : memref<504x128xf32, #tpu.memory_space<vmem>>, vector<1x128xf32>
    %c7_i32 = arith.constant 7 : i32
    %38 = arith.addi %2, %c7_i32 : i32
    %39 = arith.index_cast %38 : i32 to index
    %40 = memref.load %arg2[%39] : memref<48xi32, #tpu.memory_space<smem>>
    %41 = arith.index_cast %40 : i32 to index
    %c0_6 = arith.constant 0 : index
    %42 = vector.load %arg3[%41, %c0_6] : memref<504x128xf32, #tpu.memory_space<vmem>>, vector<1x128xf32>
    %43 = tpu.concatenate %7, %12, %17, %22, %27, %32, %37, %42 in 0 : vector<1x128xf32>, vector<1x128xf32>, vector<1x128xf32>, vector<1x128xf32>, vector<1x128xf32>, vector<1x128xf32>, vector<1x128xf32>, vector<1x128xf32> -> vector<8x128xf32>
    %c0_7 = arith.constant 0 : index
    %c0_8 = arith.constant 0 : index
    %c0_9 = arith.constant 0 : index
    %44 = vector.load %arg5[%c0_7, %c0_8, %c0_9] : memref<1x8x128xf32, #tpu.memory_space<vmem>>, vector<1x8x128xf32>
    %45 = vector.shape_cast %44 : vector<1x8x128xf32> to vector<8x128xf32>
    %46 = vector.shape_cast %43 : vector<8x128xf32> to vector<1x8x128xf32>
    tpu.vector_store %arg5[%c0_7, %c0_8, %c0_9], %46 {strides = array<i32>} : memref<1x8x128xf32, #tpu.memory_space<vmem>>, vector<1x8x128xf32>,
    return
  }
  func.func @transform_0(%arg0: i32, %arg1: i32, %arg2: memref<48xi32, #tpu.memory_space<smem>>) -> (i32, i32) {
    %c0_i32 = arith.constant 0 : i32
    %c0_i32_0 = arith.constant 0 : i32
    %c0_i32_1 = arith.constant 0 : i32
    return %c0_i32, %c0_i32_0 : i32, i32
  }
  func.func @transform_1(%arg0: i32, %arg1: i32, %arg2: memref<48xi32, #tpu.memory_space<smem>>) -> (i32, i32, i32) {
    %c0_i32 = arith.constant 0 : i32
    %c0_i32_0 = arith.constant 0 : i32
    %c0_i32_1 = arith.constant 0 : i32
    return %arg0, %c0_i32, %c0_i32_0 : i32, i32, i32
  }
  func.func @transform_2(%arg0: i32, %arg1: i32, %arg2: memref<48xi32, #tpu.memory_space<smem>>) -> (i32, i32, i32) {
    %c0_i32 = arith.constant 0 : i32
    %c0_i32_0 = arith.constant 0 : i32
    return %arg0, %arg1, %c0_i32 : i32, i32, i32
  }
}

</mosaic_0001>

<llo_original>
// kernel: tpu_custom_call.1
$region0: #{tpu_custom_call.1}
  #allocation0 [shape = 'u32[]', space=smem, size = 0x4, offset = 0x4, fixed_abs, tag = 'smem constant byte address 0x4 - core index']
  #allocation1 [shape = 'u32[72,128]{1,0:T(1,128)}', space=vmem, size = 0x9000, scoped, tag = 'internal scratch']
  #allocation2 [shape = 's32[1]{0}', space=sflag, size = 0x4, scoped, tag = 'scoped memory for tpu_custom_call.1']
  #allocation3 [shape = 'u8[512]{0}', space=smem, size = 0x200, scoped, tag = 'prefetched SMEM operand 0']
  %s0 = inlined_call_operand.vmem [shape: s32[48], index: 0, kind: input, shape index: {}]
  %s1 = inlined_call_operand.hbm [shape: f32[504,128], index: 1, kind: input, shape index: {}]
  %s2 = inlined_call_operand.vmem [shape: f32[2,24,1], index: 2, kind: input, shape index: {}]
  %s3 = inlined_call_operand.hbm [shape: f32[2,24,128], index: 3, kind: output, shape index: {}]
  %s4 = sld [smem:[#allocation0]]
  $region45: #{tpu_custom_call.1} parent=0
    _
  %s6 = ssub.s32 1, %s4
  %s7 = scalar_select 0, %s6, %s4
  %s9 = sshll.u32 %s0, 4
  %s10 = int_to_ptr.vmem [resolvable:$true] %s9
  %12 = dma.vmem_to_smem %s10, 16, [#allocation3], [#allocation2]
  %14 = dma.done [#allocation2], 16
  %15 = sfence
  $region1: #{tpu_custom_call.1} parent=0
    #allocation4 [shape = 'u8[258048]{0}', space=vmem, size = 0x3f000, scoped, tag = 'input window, operand 1, single buffered']
    #allocation5 [shape = 's32[2]{0}', space=sflag, size = 0x8, scoped, tag = 'scoped memory for tpu_custom_call.1']
    #allocation6 [shape = 's32[2]{0}', space=sflag, size = 0x8, scoped, tag = 'scoped memory for tpu_custom_call.1']
    #allocation7 [shape = 'u8[8192]{0}', space=vmem, size = 0x2000, scoped, tag = 'output window, operand 0']
    %16 = vsyncpa [#allocation5], 0
    %17 = vsyncpa [#allocation6], 0
    %s18 = scalar_lea.sflag [#allocation6], 1
    %19 = vsyncpa %s18, 0
    loop: start=0, step=1, limit=8
    $region2: #{tpu_custom_call.1} parent=1 // loop_pre_header
      _
    $region3: #{tpu_custom_call.1} parent=1 // loop_header
      %s21 = sphi 0, %s25
      %p22 = scmp.ge.s32.totalorder %s21, 8
      %s28 = sphi 0, %s40
      %s29 = sphi 0, %s36
      %s30 = sphi 0, %s28
      %s31 = sphi 0, %s29
      %s32 = sphi 0, %s30
      %s33 = sphi 0, %s31
      %s41 = sphi 0, %s41
      %s43 = sphi 0, %s41
      %s44 = sphi 0, %s43
      %s58 = sphi 0, %s44
      %s64 = sphi 0, %s66
      %s67 = sphi 0, %s64
      %s68 = sphi 0, %s67
      %s84 = sphi 0, %s68
      %s92 = sphi 0, %s94
      %s95 = sphi 0, %s92
      %s96 = sphi 0, %s95
      %s112 = sphi 0, %s96
    $region4: #{tpu_custom_call.1} parent=1 // loop_header_branch
      %24 = sbr.rel (%p22) target = $region8
    $region5: #{tpu_custom_call.1} parent=1 // loop_body
      %s26 = ssub.s32 %s21, 1
      %s27 = ssub.s32 %s21, 2
      %s34 = sadd.s32 1, %s29
      %p35 = scmp.ge.s32.totalorder %s34, 3
      %s36 = scalar_select %p35, 0, %s34
      %s37 = sadd.s32 1, %s28
      %s38 = scalar_select %p35, %s37, %s28
      %p39 = scmp.ge.s32.totalorder %s38, 2
      %s40 = scalar_select %p39, 0, %s38
      %s42 = sadd.s32 %s41, 1
      %p45 = scmp.eq.s32.totalorder %s21, 5
      %p46 = scmp.ne.s32.totalorder %s41, %s43
      %p47 = scmp.eq.s32.totalorder %s21, 0
      %p48 = por %p46, %p47
      %p49 = scmp.ne.s32.totalorder %s41, %s43
      %p50 = scmp.eq.s32.totalorder %s26, 5
      %p51 = por %p49, %p50
      %p52 = scmp.ne.s32.totalorder %s43, %s44
      %p53 = scmp.eq.s32.totalorder %s26, 0
      %p54 = por %p52, %p53
      %p55 = scmp.ne.s32.totalorder %s43, %s44
      %p56 = scmp.eq.s32.totalorder %s27, 5
      %p57 = por %p55, %p56
      %p59 = scmp.ne.s32.totalorder %s44, %s58
      %p60 = scmp.eq.s32.totalorder %s27, 0
      %p61 = por %p59, %p60
      %s62 = ssub.s32 %s28, %s40
      %p63 = scmp.eq.s32.totalorder %s62, 0
      %s65 = sadd.s32 %s64, 1
      %s66 = scalar_select %p63, %s64, %s65
      %p69 = pneg %p63
      %p70 = scmp.eq.s32.totalorder %s21, 5
      %p71 = por %p69, %p70
      %p72 = scmp.ne.s32.totalorder %s64, %s67
      %p73 = scmp.eq.s32.totalorder %s21, 0
      %p74 = por %p72, %p73
      %p75 = scmp.ne.s32.totalorder %s64, %s67
      %p76 = scmp.eq.s32.totalorder %s26, 5
      %p77 = por %p75, %p76
      %p78 = scmp.ne.s32.totalorder %s67, %s68
      %p79 = scmp.eq.s32.totalorder %s26, 0
      %p80 = por %p78, %p79
      %p81 = scmp.ne.s32.totalorder %s67, %s68
      %p82 = scmp.eq.s32.totalorder %s27, 5
      %p83 = por %p81, %p82
      %p85 = scmp.ne.s32.totalorder %s68, %s84
      %p86 = scmp.eq.s32.totalorder %s27, 0
      %p87 = por %p85, %p86
      %s88 = ssub.s32 %s28, %s40
      %s89 = ssub.s32 %s29, %s36
      %s90 = sor.u32 %s88, %s89
      %p91 = scmp.eq.s32.totalorder %s90, 0
      %s93 = sadd.s32 %s92, 1
      %s94 = scalar_select %p91, %s92, %s93
      %p97 = pneg %p91
      %p98 = scmp.eq.s32.totalorder %s21, 5
      %p99 = por %p97, %p98
      %p100 = scmp.ne.s32.totalorder %s92, %s95
      %p101 = scmp.eq.s32.totalorder %s21, 0
      %p102 = por %p100, %p101
      %p103 = scmp.ne.s32.totalorder %s92, %s95
      %p104 = scmp.eq.s32.totalorder %s26, 5
      %p105 = por %p103, %p104
      %p106 = scmp.ne.s32.totalorder %s95, %s96
      %p107 = scmp.eq.s32.totalorder %s26, 0
      %p108 = por %p106, %p107
      %p109 = scmp.ne.s32.totalorder %s95, %s96
      %p110 = scmp.eq.s32.totalorder %s27, 5
      %p111 = por %p109, %p110
      %p113 = scmp.ne.s32.totalorder %s96, %s112
      %p114 = scmp.eq.s32.totalorder %s27, 0
      %p115 = por %p113, %p114
      %p116 = scmp.le.s32.totalorder 1, %s21
      %p117 = scmp.lt.s32.totalorder %s21, 7
      %p118 = pnand %p116, %p117
      %p119 = pneg %p118
      // Predicated region
      $region9: #{tpu_custom_call.1} parent=5 // pred_check
        _
      $region10: #{tpu_custom_call.1} parent=5 // pred_check_branch
        %121 = sbr.rel (%p118) target = $region12
      $region11: #{tpu_custom_call.1} parent=5 // pred_region
        %s122 = ssub.s32 %s21, 1
        // Predicated region
        $region13: #{tpu_custom_call.1} parent=11 // pred_check
          %p123 = pneg %p54
        $region14: #{tpu_custom_call.1} parent=11 // pred_check_branch
          %125 = sbr.rel (%p123) target = $region16
        $region15: #{tpu_custom_call.1} parent=11 // pred_region
          %127 = vsyncadd [#allocation5], 0
          %s128 = sshll.u32 %s1, 4
          %s129 = int_to_ptr.hbm [resolvable:$true] %s128
          %s130 = sshll.u32 [#allocation4], 4
          %s131 = int_to_ptr.vmem [resolvable:$true] %s130
          %136 = dma.hbm_to_vmem [thread:$0]  %s129, 8064, %s131, [#allocation5], 128, 128, 8
        $region16: #{tpu_custom_call.1} parent=11 // pred_fallthru
          _
      $region12: #{tpu_custom_call.1} parent=5 // pred_fallthru
        _
      %p137 = scmp.lt.s32.totalorder %s21, 6
      // Predicated region
      $region17: #{tpu_custom_call.1} parent=5 // pred_check
        %p138 = pneg %p137
      $region18: #{tpu_custom_call.1} parent=5 // pred_check_branch
        %140 = sbr.rel (%p138) target = $region20
      $region19: #{tpu_custom_call.1} parent=5 // pred_region
        // Predicated region
        $region21: #{tpu_custom_call.1} parent=19 // pred_check
          %p141 = pneg %p74
        $region22: #{tpu_custom_call.1} parent=19 // pred_check_branch
          %143 = sbr.rel (%p141) target = $region24
        $region23: #{tpu_custom_call.1} parent=19 // pred_region
          %p144 = scmp.lt.s32.totalorder %s28, 1
          %s145 = scalar_select %p144, %s28, 1
          %s146 = smul.addr %s145, 3
          %s147 = smul.addr %s146, 8
          %s148 = scalar_lea.vmem %s2, %s147
        $region24: #{tpu_custom_call.1} parent=19 // pred_fallthru
          _
      $region20: #{tpu_custom_call.1} parent=5 // pred_fallthru
        _
      %p149 = scmp.le.s32.totalorder 1, %s21
      %p150 = scmp.lt.s32.totalorder %s21, 7
      %p151 = pnand %p149, %p150
      %p152 = pneg %p151
      // Predicated region
      $region25: #{tpu_custom_call.1} parent=5 // pred_check
        _
      $region26: #{tpu_custom_call.1} parent=5 // pred_check_branch
        %154 = sbr.rel (%p151) target = $region28
      $region27: #{tpu_custom_call.1} parent=5 // pred_region
        %s155 = ssub.s32 %s21, 1
        // Predicated region
        $region29: #{tpu_custom_call.1} parent=27 // pred_check
          %p156 = pneg %p54
        $region30: #{tpu_custom_call.1} parent=27 // pred_check_branch
          %158 = sbr.rel (%p156) target = $region32
        $region31: #{tpu_custom_call.1} parent=27 // pred_region
          %160 = dma.done [#allocation5], 8064
        $region32: #{tpu_custom_call.1} parent=27 // pred_fallthru
          _
        %p161 = pneg %p54
        %p162 = pneg %p51
        %p163 = scmp.lt.s32.totalorder %s30, 1
        %s164 = scalar_select %p163, %s30, 1
        %s165 = smul.addr %s164, 3
        %s166 = smul.addr %s165, 8
        %s167 = scalar_lea.vmem %s2, %s166
        %p168 = pneg %p80
        %p169 = pneg %p77
        %p170 = pneg %p108
        %p171 = pneg %p105
        %s172 = sand.u32 %s95, 1
        %s173 = scalar_lea.sflag [#allocation6], %s172
        %s174 = sand.u32 %s95, 1
        %s175 = smul.addr %s174, 8
        %s176 = scalar_lea.vmem [#allocation7], %s175
        %p177 = scmp.lt.s32.totalorder %s30, 1
        %s178 = scalar_select %p177, %s30, 1
        %s179 = smul.addr %s178, 3
        %s180 = smul.addr %s179, 8
        %s181 = scalar_lea.vmem %s2, %s180
        %s182 = smul.u32 %s30, 24
        %s183 = smul.u32 %s31, 8
        %s184 = sadd.s32 %s182, %s183
        %s185 = sld [smem:[#allocation3 + %s184]]
        %s186 = scalar_lea.vmem [#allocation4], %s185
        %v187 = vld [vmem:[%s186] sm:$0x1]
        %s188 = sadd.s32 %s184, 1
        %s189 = sld [smem:[#allocation3 + %s188]]
        %s190 = scalar_lea.vmem [#allocation4], %s189
        %v191 = vld [vmem:[%s190] sm:$0x1]
        %s192 = sadd.s32 %s184, 2
        %s193 = sld [smem:[#allocation3 + %s192]]
        %s194 = scalar_lea.vmem [#allocation4], %s193
        %v195 = vld [vmem:[%s194] sm:$0x1]
        %s196 = sadd.s32 %s184, 3
        %s197 = sld [smem:[#allocation3 + %s196]]
        %s198 = scalar_lea.vmem [#allocation4], %s197
        %v199 = vld [vmem:[%s198] sm:$0x1]
        %s200 = sadd.s32 %s184, 4
        %s201 = sld [smem:[#allocation3 + %s200]]
        %s202 = scalar_lea.vmem [#allocation4], %s201
        %v203 = vld [vmem:[%s202] sm:$0x1]
        %s204 = sadd.s32 %s184, 5
        %s205 = sld [smem:[#allocation3 + %s204]]
        %s206 = scalar_lea.vmem [#allocation4], %s205
        %v207 = vld [vmem:[%s206] sm:$0x1]
        %s208 = sadd.s32 %s184, 6
        %s209 = sld [smem:[#allocation3 + %s208]]
        %s210 = scalar_lea.vmem [#allocation4], %s209
        %v211 = vld [vmem:[%s210] sm:$0x1]
        %s212 = sadd.s32 %s184, 7
        %s213 = sld [smem:[#allocation3 + %s212]]
        %s214 = scalar_lea.vmem [#allocation4], %s213
        %v215 = vld [vmem:[%s214] sm:$0x1]
        %v217 = vrot.slane %v191, 7
        %v220 = vrot.slane %v195, 6
        %v223 = vrot.slane %v199, 5
        %v226 = vrot.slane %v203, 4
        %v229 = vrot.slane %v207, 3
        %v232 = vrot.slane %v211, 2
        %v235 = vrot.slane %v215, 1
        %vm237 = vcmask 1040384
        %v238 = vsel %vm237, %v187, %v217
        %vm239 = vcmask 1041408
        %v240 = vsel %vm239, %v238, %v220
        %vm241 = vcmask 1042432
        %v242 = vsel %vm241, %v240, %v223
        %vm243 = vcmask 1043456
        %v244 = vsel %vm243, %v242, %v226
        %vm245 = vcmask 1044480
        %v246 = vsel %vm245, %v244, %v229
        %vm247 = vcmask 1045504
        %v248 = vsel %vm247, %v246, %v232
        %vm249 = vcmask 1046528
        %v250 = vsel %vm249, %v248, %v235
        %251 = vst [vmem:[%s176] sm:$0xff] %v250
        %s252 = sand.u32 %s95, 1
        %s253 = scalar_lea.sflag [#allocation6], %s252
        %s254 = sand.u32 %s95, 1
        %s255 = smul.addr %s254, 8
        %s256 = scalar_lea.vmem [#allocation7], %s255
        // Predicated region
        $region33: #{tpu_custom_call.1} parent=27 // pred_check
          %p257 = pneg %p105
        $region34: #{tpu_custom_call.1} parent=27 // pred_check_branch
          %259 = sbr.rel (%p257) target = $region36
        $region35: #{tpu_custom_call.1} parent=27 // pred_region
          %261 = vsyncadd %s253, 0
          %s262 = smul.addr %s30, 3
          %s263 = sadd.s32 %s31, %s262
          %s264 = smul.addr %s263, 8
          %s265 = scalar_lea.hbm %s3, %s264
          %s267 = sshll.u32 %s256, 4
          %s268 = int_to_ptr.vmem [resolvable:$true] %s267
          %s269 = sshll.u32 %s265, 4
          %s270 = int_to_ptr.hbm [resolvable:$true] %s269
          %272 = dma.vmem_to_hbm [thread:$0]  %s268, 128, %s270, %s253
        $region36: #{tpu_custom_call.1} parent=27 // pred_fallthru
          _
      $region28: #{tpu_custom_call.1} parent=5 // pred_fallthru
        _
      %p273 = scmp.le.s32.totalorder 2, %s21
      // Predicated region
      $region37: #{tpu_custom_call.1} parent=5 // pred_check
        %p274 = pneg %p273
      $region38: #{tpu_custom_call.1} parent=5 // pred_check_branch
        %276 = sbr.rel (%p274) target = $region40
      $region39: #{tpu_custom_call.1} parent=5 // pred_region
        %s277 = ssub.s32 %s21, 2
        // Predicated region
        $region41: #{tpu_custom_call.1} parent=39 // pred_check
          %p278 = pneg %p111
        $region42: #{tpu_custom_call.1} parent=39 // pred_check_branch
          %280 = sbr.rel (%p278) target = $region44
        $region43: #{tpu_custom_call.1} parent=39 // pred_region
          %s281 = sand.u32 %s96, 1
          %s282 = scalar_lea.sflag [#allocation6], %s281
          %s283 = sand.u32 %s96, 1
          %s284 = smul.addr %s283, 8
          %s285 = scalar_lea.vmem [#allocation7], %s284
          %287 = dma.done %s282, 128
        $region44: #{tpu_custom_call.1} parent=39 // pred_fallthru
          _
      $region40: #{tpu_custom_call.1} parent=5 // pred_fallthru
        _
    $region6: #{tpu_custom_call.1} parent=1 // loop_footer
      %s25 = sadd.s32 1, %s21
    $region7: #{tpu_custom_call.1} parent=1 // loop_footer_branch
      %20 = sbr.rel target = $region3
    $region8: #{tpu_custom_call.1} parent=1 // loop_exit
      _
    %288 = vsyncpa [#allocation5], 1
    %s289 = scalar_lea.sflag [#allocation5], 1
    %290 = vsyncpa %s289, 1
    %291 = vsyncpa [#allocation6], 1
    %s292 = scalar_lea.sflag [#allocation6], 1
    %293 = vsyncpa %s292, 1

</llo_original>
